<compile_context>
chip_gen: v7x
topology: tpu7x:2x2x1
jax: 0.10.0
libtpu: 0.0.40
codegen_flags: <defaults>
</compile_context>

<pallas_src>
import jax
import jax.numpy as jnp
from jax.experimental import pallas as pl
from jax.experimental.pallas import tpu as pltpu

LEAK_FACTOR = 0.2
NUM_NOISE = 3
HIDDEN = 10
OUT = 4
BN_EPS = 1e-5

# Row layout of the packed parameter slab (lane-padded to 128, sublane-padded to 24).
W1_ROW = 0                     # rows 0..2   : w1   (NUM_NOISE, HIDDEN)
B1_ROW = W1_ROW + NUM_NOISE    # row  3      : b1   (HIDDEN,)
GAMMA_ROW = B1_ROW + 1         # row  4      : bn gamma (HIDDEN,)
BETA_ROW = GAMMA_ROW + 1       # row  5      : bn beta  (HIDDEN,)
W2_ROW = BETA_ROW + 1          # rows 6..15  : w2   (HIDDEN, OUT)
B2_ROW = W2_ROW + HIDDEN       # row  16     : b2   (OUT,)
PACK_ROWS = 24                 # pad 17 rows -> multiple of 8 sublanes
PACK_LANES = 128               # one lane-dense vreg row


def alpha_generator_kernel(x_ref, p_ref, o_ref):
    x = x_ref[...]                                            # (G, group, 3) f32

    def prow(r):
        # One zero-padded 128-lane parameter row, shaped for 3-D broadcasting.
        return p_ref[r:r + 1, :][None]                        # (1, 1, 128)

    # ---- Linear(NUM_NOISE -> HIDDEN): unrolled VPU FMAs (K=3), no MXU ----
    # NOTE: the x[:, :, k:k+1] lane-extract+broadcasts land on the XLU; at these sizes the
    # kernel is launch/DMA-overhead bound so they are free filler (see review).
    h = x[:, :, 0:1] * prow(W1_ROW)
    for k in range(1, NUM_NOISE):
        h = h + x[:, :, k:k + 1] * prow(W1_ROW + k)
    h = h + prow(B1_ROW)                                      # (G, group, 128)

    # ---- LeakyReLU(0.2) ----
    h = jnp.where(h > 0, h, LEAK_FACTOR * h)

    # ---- BatchNorm1d(HIDDEN), training mode: per-group biased batch stats, two-pass ----
    mean = jnp.mean(h, axis=1, keepdims=True)                 # (G, 1, 128)
    centered = h - mean
    var = jnp.mean(centered * centered, axis=1, keepdims=True)
    h = centered * jax.lax.rsqrt(var + BN_EPS) * prow(GAMMA_ROW) + prow(BETA_ROW)

    # ---- Linear(HIDDEN -> OUT): unrolled VPU FMAs (K=10), no MXU ----
    logits = h[:, :, 0:1] * prow(W2_ROW)
    for j in range(1, HIDDEN):
        logits = logits + h[:, :, j:j + 1] * prow(W2_ROW + j)
    logits = logits + prow(B2_ROW)                            # lanes >= OUT are exactly 0

    # ---- Softmax over the feature dim, lane-masked to the first OUT lanes ----
    lane = jax.lax.broadcasted_iota(jnp.int32, logits.shape, dimension=2)
    masked = jnp.where(lane < OUT, logits, jnp.float32(-1e30))
    m = jnp.max(masked, axis=2, keepdims=True)
    e = jnp.exp(masked - m)                                   # masked lanes underflow to 0
    s = jnp.sum(e, axis=2, keepdims=True)
    o_ref[...] = e / s                                        # exact divide: rows sum to 1


def pack_params(w1, b1, gamma, beta, w2, b2):
    """Pack all parameters into a single zero-padded (24, 128) f32 slab."""
    p = jnp.zeros((PACK_ROWS, PACK_LANES), jnp.float32)
    p = p.at[W1_ROW:W1_ROW + NUM_NOISE, 0:HIDDEN].set(w1)
    p = p.at[B1_ROW, 0:HIDDEN].set(b1.reshape(-1))
    p = p.at[GAMMA_ROW, 0:HIDDEN].set(gamma.reshape(-1))
    p = p.at[BETA_ROW, 0:HIDDEN].set(beta.reshape(-1))
    p = p.at[W2_ROW:W2_ROW + HIDDEN, 0:OUT].set(w2)
    p = p.at[B2_ROW, 0:OUT].set(b2.reshape(-1))
    return p


def alpha_generator_forward(noise, packed_params):
    """noise: (B, 3) for one forward pass, or (G, B, 3) for G independent forward passes
    (each group gets its own BatchNorm batch statistics). Returns (..., OUT)."""
    squeeze = noise.ndim == 2
    if squeeze:
        noise = noise[None]
    G, group, _ = noise.shape
    vmem = pltpu.MemorySpace.VMEM

    flops = int(G * group * (2 * NUM_NOISE * HIDDEN + 4 * HIDDEN
                             + 8 * HIDDEN + 2 * HIDDEN * OUT + 4 * OUT))
    transcendentals = int(G * (HIDDEN + group * OUT))
    bytes_accessed = int(noise.size * 4 + packed_params.size * 4
                         + G * group * PACK_LANES * 4)

    # Single full-array block: total footprint is a few KiB per group, far below every
    # VMEM limit (128 MiB v5e/v6e, 64 MiB v7x) -> no tiling / vmem_limit tuning needed.
    out_padded = pl.pallas_call(
        alpha_generator_kernel,
        out_shape=jax.ShapeDtypeStruct((G, group, PACK_LANES), jnp.float32),
        in_specs=[pl.BlockSpec(memory_space=vmem),
                  pl.BlockSpec(memory_space=vmem)],
        out_specs=pl.BlockSpec(memory_space=vmem),
        cost_estimate=pl.CostEstimate(flops=flops,
                                      transcendentals=transcendentals,
                                      bytes_accessed=bytes_accessed),
    )(noise, packed_params)

    out = out_padded[..., :OUT]          # lane-dense kernel writeback; slice on host
    if squeeze:
        out = out[0]
    return out


def init_params(key):
    # Deterministic synthetic init (PyTorch-like uniform bounds), weights stored (in, out)
    k1, k2, k3, k4 = jax.random.split(key, 4)
    bound1 = 1.0 / jnp.sqrt(NUM_NOISE)
    w1 = jax.random.uniform(k1, (NUM_NOISE, HIDDEN), jnp.float32, -bound1, bound1)
    b1 = jax.random.uniform(k2, (1, HIDDEN), jnp.float32, -bound1, bound1)
    gamma = jnp.ones((1, HIDDEN), jnp.float32)
    beta = jnp.zeros((1, HIDDEN), jnp.float32)
    bound2 = 1.0 / jnp.sqrt(HIDDEN)
    w2 = jax.random.uniform(k3, (HIDDEN, OUT), jnp.float32, -bound2, bound2)
    b2 = jax.random.uniform(k4, (1, OUT), jnp.float32, -bound2, bound2)
    return w1, b1, gamma, beta, w2, b2


def reference_forward(noise, w1, b1, gamma, beta, w2, b2):
    h = noise @ w1 + b1
    h = jnp.where(h > 0, h, LEAK_FACTOR * h)
    mean = jnp.mean(h, axis=0, keepdims=True)
    var = jnp.mean((h - mean) ** 2, axis=0, keepdims=True)
    h = (h - mean) / jnp.sqrt(var + BN_EPS) * gamma + beta
    logits = h @ w2 + b2
    return jax.nn.softmax(logits, axis=1)


if __name__ == "__main__":
    key = jax.random.PRNGKey(0)
    k_noise, k_params = jax.random.split(key)
    G, group = 4, 8                       # 4 independent forward passes, batch 8 each
    noise = jax.random.normal(k_noise, (G, group, NUM_NOISE), jnp.float32)
    params = init_params(k_params)
    packed = pack_params(*params)

    out = alpha_generator_forward(noise, packed)
    out = jax.block_until_ready(out)

    ref = jax.vmap(lambda n: reference_forward(n, *params))(noise)
    assert out.shape == (G, group, OUT)
    assert bool(jnp.all(jnp.isfinite(out)))
    assert bool(jnp.allclose(out, ref, atol=1e-4, rtol=1e-4))
    # exact-divide softmax: every row sums to 1
    assert bool(jnp.allclose(jnp.sum(out, axis=-1), jnp.ones((G, group)), atol=1e-5))

    # Original module call convention: a single (B, 3) batch.
    out_single = alpha_generator_forward(noise[0], packed)
    out_single = jax.block_until_ready(out_single)
    assert out_single.shape == (group, OUT)
    assert bool(jnp.allclose(out_single, ref[0], atol=1e-4, rtol=1e-4))

    print("KERNEL_OK")
</pallas_src>

<mosaic_0001>
module attributes {stable_mosaic.version = 11 : i64} {
  func.func @alpha_generator_kernel(%arg0: memref<4x8x3xf32, #tpu.memory_space<vmem>>, %arg1: memref<24x128xf32, #tpu.memory_space<vmem>>, %arg2: memref<4x8x128xf32, #tpu.memory_space<vmem>>) attributes {dimension_semantics = [], scalar_prefetch = 0 : i64, scratch_operands = 0 : i64, tpu.core_type = #tpu.core_type<tc>} {
    %c0 = arith.constant 0 : index
    %c0_0 = arith.constant 0 : index
    %c0_1 = arith.constant 0 : index
    %0 = vector.load %arg0[%c0, %c0_0, %c0_1] : memref<4x8x3xf32, #tpu.memory_space<vmem>>, vector<4x8x3xf32>
    %1 = vector.extract_strided_slice %0 {offsets = [0, 0, 0], sizes = [4, 8, 1], strides = [1, 1, 1]} : vector<4x8x3xf32> to vector<4x8x1xf32>
    %c0_2 = arith.constant 0 : index
    %c0_3 = arith.constant 0 : index
    %2 = vector.load %arg1[%c0_2, %c0_3] : memref<24x128xf32, #tpu.memory_space<vmem>>, vector<1x128xf32>
    %3 = vector.shape_cast %2 : vector<1x128xf32> to vector<1x1x128xf32>
    %4 = vector.broadcast %1 : vector<4x8x1xf32> to vector<4x8x128xf32>
    %5 = vector.broadcast %3 : vector<1x1x128xf32> to vector<4x8x128xf32>
    %6 = arith.mulf %4, %5 : vector<4x8x128xf32>
    %7 = vector.extract_strided_slice %0 {offsets = [0, 0, 1], sizes = [4, 8, 1], strides = [1, 1, 1]} : vector<4x8x3xf32> to vector<4x8x1xf32>
    %c1 = arith.constant 1 : index
    %c0_4 = arith.constant 0 : index
    %8 = vector.load %arg1[%c1, %c0_4] : memref<24x128xf32, #tpu.memory_space<vmem>>, vector<1x128xf32>
    %9 = vector.shape_cast %8 : vector<1x128xf32> to vector<1x1x128xf32>
    %10 = vector.broadcast %7 : vector<4x8x1xf32> to vector<4x8x128xf32>
    %11 = vector.broadcast %9 : vector<1x1x128xf32> to vector<4x8x128xf32>
    %12 = arith.mulf %10, %11 : vector<4x8x128xf32>
    %13 = arith.addf %6, %12 : vector<4x8x128xf32>
    %14 = vector.extract_strided_slice %0 {offsets = [0, 0, 2], sizes = [4, 8, 1], strides = [1, 1, 1]} : vector<4x8x3xf32> to vector<4x8x1xf32>
    %c2 = arith.constant 2 : index
    %c0_5 = arith.constant 0 : index
    %15 = vector.load %arg1[%c2, %c0_5] : memref<24x128xf32, #tpu.memory_space<vmem>>, vector<1x128xf32>
    %16 = vector.shape_cast %15 : vector<1x128xf32> to vector<1x1x128xf32>
    %17 = vector.broadcast %14 : vector<4x8x1xf32> to vector<4x8x128xf32>
    %18 = vector.broadcast %16 : vector<1x1x128xf32> to vector<4x8x128xf32>
    %19 = arith.mulf %17, %18 : vector<4x8x128xf32>
    %20 = arith.addf %13, %19 : vector<4x8x128xf32>
    %c3 = arith.constant 3 : index
    %c0_6 = arith.constant 0 : index
    %21 = vector.load %arg1[%c3, %c0_6] : memref<24x128xf32, #tpu.memory_space<vmem>>, vector<1x128xf32>
    %22 = vector.shape_cast %21 : vector<1x128xf32> to vector<1x1x128xf32>
    %23 = vector.broadcast %22 : vector<1x1x128xf32> to vector<4x8x128xf32>
    %24 = arith.addf %20, %23 : vector<4x8x128xf32>
    %cst = arith.constant 0.000000e+00 : f32
    %25 = vector.broadcast %cst : f32 to vector<4x8x128xf32>
    %26 = arith.cmpf ogt, %24, %25 : vector<4x8x128xf32>
    %cst_7 = arith.constant 2.000000e-01 : f32
    %27 = vector.broadcast %cst_7 : f32 to vector<4x8x128xf32>
    %28 = arith.mulf %27, %24 : vector<4x8x128xf32>
    %29 = arith.select %26, %24, %28 : vector<4x8x128xi1>, vector<4x8x128xf32>
    %cst_8 = arith.constant dense<0.000000e+00> : vector<4x128xf32>
    %30 = vector.multi_reduction <add>, %29, %cst_8 [1] : vector<4x8x128xf32> to vector<4x128xf32>
    %31 = vector.shape_cast %30 : vector<4x128xf32> to vector<4x1x128xf32>
    %cst_9 = arith.constant 8.000000e+00 : f32
    %32 = vector.broadcast %cst_9 : f32 to vector<4x1x128xf32>
    %33 = arith.divf %31, %32 : vector<4x1x128xf32>
    %34 = vector.broadcast %33 : vector<4x1x128xf32> to vector<4x8x128xf32>
    %35 = arith.subf %29, %34 : vector<4x8x128xf32>
    %36 = arith.mulf %35, %35 : vector<4x8x128xf32>
    %cst_10 = arith.constant dense<0.000000e+00> : vector<4x128xf32>
    %37 = vector.multi_reduction <add>, %36, %cst_10 [1] : vector<4x8x128xf32> to vector<4x128xf32>
    %38 = vector.shape_cast %37 : vector<4x128xf32> to vector<4x1x128xf32>
    %cst_11 = arith.constant 8.000000e+00 : f32
    %39 = vector.broadcast %cst_11 : f32 to vector<4x1x128xf32>
    %40 = arith.divf %38, %39 : vector<4x1x128xf32>
    %cst_12 = arith.constant 9.99999974E-6 : f32
    %41 = vector.broadcast %cst_12 : f32 to vector<4x1x128xf32>
    %42 = arith.addf %40, %41 : vector<4x1x128xf32>
    %43 = math.rsqrt %42 : vector<4x1x128xf32>
    %44 = vector.broadcast %43 : vector<4x1x128xf32> to vector<4x8x128xf32>
    %45 = arith.mulf %35, %44 : vector<4x8x128xf32>
    %c4 = arith.constant 4 : index
    %c0_13 = arith.constant 0 : index
    %46 = vector.load %arg1[%c4, %c0_13] : memref<24x128xf32, #tpu.memory_space<vmem>>, vector<1x128xf32>
    %47 = vector.shape_cast %46 : vector<1x128xf32> to vector<1x1x128xf32>
    %48 = vector.broadcast %47 : vector<1x1x128xf32> to vector<4x8x128xf32>
    %49 = arith.mulf %45, %48 : vector<4x8x128xf32>
    %c5 = arith.constant 5 : index
    %c0_14 = arith.constant 0 : index
    %50 = vector.load %arg1[%c5, %c0_14] : memref<24x128xf32, #tpu.memory_space<vmem>>, vector<1x128xf32>
    %51 = vector.shape_cast %50 : vector<1x128xf32> to vector<1x1x128xf32>
    %52 = vector.broadcast %51 : vector<1x1x128xf32> to vector<4x8x128xf32>
    %53 = arith.addf %49, %52 : vector<4x8x128xf32>
    %54 = vector.extract_strided_slice %53 {offsets = [0, 0, 0], sizes = [4, 8, 1], strides = [1, 1, 1]} : vector<4x8x128xf32> to vector<4x8x1xf32>
    %c6 = arith.constant 6 : index
    %c0_15 = arith.constant 0 : index
    %55 = vector.load %arg1[%c6, %c0_15] : memref<24x128xf32, #tpu.memory_space<vmem>>, vector<1x128xf32>
    %56 = vector.shape_cast %55 : vector<1x128xf32> to vector<1x1x128xf32>
    %57 = vector.broadcast %54 : vector<4x8x1xf32> to vector<4x8x128xf32>
    %58 = vector.broadcast %56 : vector<1x1x128xf32> to vector<4x8x128xf32>
    %59 = arith.mulf %57, %58 : vector<4x8x128xf32>
    %60 = vector.extract_strided_slice %53 {offsets = [0, 0, 1], sizes = [4, 8, 1], strides = [1, 1, 1]} : vector<4x8x128xf32> to vector<4x8x1xf32>
    %c7 = arith.constant 7 : index
    %c0_16 = arith.constant 0 : index
    %61 = vector.load %arg1[%c7, %c0_16] : memref<24x128xf32, #tpu.memory_space<vmem>>, vector<1x128xf32>
    %62 = vector.shape_cast %61 : vector<1x128xf32> to vector<1x1x128xf32>
    %63 = vector.broadcast %60 : vector<4x8x1xf32> to vector<4x8x128xf32>
    %64 = vector.broadcast %62 : vector<1x1x128xf32> to vector<4x8x128xf32>
    %65 = arith.mulf %63, %64 : vector<4x8x128xf32>
    %66 = arith.addf %59, %65 : vector<4x8x128xf32>
    %67 = vector.extract_strided_slice %53 {offsets = [0, 0, 2], sizes = [4, 8, 1], strides = [1, 1, 1]} : vector<4x8x128xf32> to vector<4x8x1xf32>
    %c8 = arith.constant 8 : index
    %c0_17 = arith.constant 0 : index
    %68 = vector.load %arg1[%c8, %c0_17] : memref<24x128xf32, #tpu.memory_space<vmem>>, vector<1x128xf32>
    %69 = vector.shape_cast %68 : vector<1x128xf32> to vector<1x1x128xf32>
    %70 = vector.broadcast %67 : vector<4x8x1xf32> to vector<4x8x128xf32>
    %71 = vector.broadcast %69 : vector<1x1x128xf32> to vector<4x8x128xf32>
    %72 = arith.mulf %70, %71 : vector<4x8x128xf32>
    %73 = arith.addf %66, %72 : vector<4x8x128xf32>
    %74 = vector.extract_strided_slice %53 {offsets = [0, 0, 3], sizes = [4, 8, 1], strides = [1, 1, 1]} : vector<4x8x128xf32> to vector<4x8x1xf32>
    %c9 = arith.constant 9 : index
    %c0_18 = arith.constant 0 : index
    %75 = vector.load %arg1[%c9, %c0_18] : memref<24x128xf32, #tpu.memory_space<vmem>>, vector<1x128xf32>
    %76 = vector.shape_cast %75 : vector<1x128xf32> to vector<1x1x128xf32>
    %77 = vector.broadcast %74 : vector<4x8x1xf32> to vector<4x8x128xf32>
    %78 = vector.broadcast %76 : vector<1x1x128xf32> to vector<4x8x128xf32>
    %79 = arith.mulf %77, %78 : vector<4x8x128xf32>
    %80 = arith.addf %73, %79 : vector<4x8x128xf32>
    %81 = vector.extract_strided_slice %53 {offsets = [0, 0, 4], sizes = [4, 8, 1], strides = [1, 1, 1]} : vector<4x8x128xf32> to vector<4x8x1xf32>
    %c10 = arith.constant 10 : index
    %c0_19 = arith.constant 0 : index
    %82 = vector.load %arg1[%c10, %c0_19] : memref<24x128xf32, #tpu.memory_space<vmem>>, vector<1x128xf32>
    %83 = vector.shape_cast %82 : vector<1x128xf32> to vector<1x1x128xf32>
    %84 = vector.broadcast %81 : vector<4x8x1xf32> to vector<4x8x128xf32>
    %85 = vector.broadcast %83 : vector<1x1x128xf32> to vector<4x8x128xf32>
    %86 = arith.mulf %84, %85 : vector<4x8x128xf32>
    %87 = arith.addf %80, %86 : vector<4x8x128xf32>
    %88 = vector.extract_strided_slice %53 {offsets = [0, 0, 5], sizes = [4, 8, 1], strides = [1, 1, 1]} : vector<4x8x128xf32> to vector<4x8x1xf32>
    %c11 = arith.constant 11 : index
    %c0_20 = arith.constant 0 : index
    %89 = vector.load %arg1[%c11, %c0_20] : memref<24x128xf32, #tpu.memory_space<vmem>>, vector<1x128xf32>
    %90 = vector.shape_cast %89 : vector<1x128xf32> to vector<1x1x128xf32>
    %91 = vector.broadcast %88 : vector<4x8x1xf32> to vector<4x8x128xf32>
    %92 = vector.broadcast %90 : vector<1x1x128xf32> to vector<4x8x128xf32>
    %93 = arith.mulf %91, %92 : vector<4x8x128xf32>
    %94 = arith.addf %87, %93 : vector<4x8x128xf32>
    %95 = vector.extract_strided_slice %53 {offsets = [0, 0, 6], sizes = [4, 8, 1], strides = [1, 1, 1]} : vector<4x8x128xf32> to vector<4x8x1xf32>
    %c12 = arith.constant 12 : index
    %c0_21 = arith.constant 0 : index
    %96 = vector.load %arg1[%c12, %c0_21] : memref<24x128xf32, #tpu.memory_space<vmem>>, vector<1x128xf32>
    %97 = vector.shape_cast %96 : vector<1x128xf32> to vector<1x1x128xf32>
    %98 = vector.broadcast %95 : vector<4x8x1xf32> to vector<4x8x128xf32>
    %99 = vector.broadcast %97 : vector<1x1x128xf32> to vector<4x8x128xf32>
    %100 = arith.mulf %98, %99 : vector<4x8x128xf32>
    %101 = arith.addf %94, %100 : vector<4x8x128xf32>
    %102 = vector.extract_strided_slice %53 {offsets = [0, 0, 7], sizes = [4, 8, 1], strides = [1, 1, 1]} : vector<4x8x128xf32> to vector<4x8x1xf32>
    %c13 = arith.constant 13 : index
    %c0_22 = arith.constant 0 : index
    %103 = vector.load %arg1[%c13, %c0_22] : memref<24x128xf32, #tpu.memory_space<vmem>>, vector<1x128xf32>
    %104 = vector.shape_cast %103 : vector<1x128xf32> to vector<1x1x128xf32>
    %105 = vector.broadcast %102 : vector<4x8x1xf32> to vector<4x8x128xf32>
    %106 = vector.broadcast %104 : vector<1x1x128xf32> to vector<4x8x128xf32>
    %107 = arith.mulf %105, %106 : vector<4x8x128xf32>
    %108 = arith.addf %101, %107 : vector<4x8x128xf32>
    %109 = vector.extract_strided_slice %53 {offsets = [0, 0, 8], sizes = [4, 8, 1], strides = [1, 1, 1]} : vector<4x8x128xf32> to vector<4x8x1xf32>
    %c14 = arith.constant 14 : index
    %c0_23 = arith.constant 0 : index
    %110 = vector.load %arg1[%c14, %c0_23] : memref<24x128xf32, #tpu.memory_space<vmem>>, vector<1x128xf32>
    %111 = vector.shape_cast %110 : vector<1x128xf32> to vector<1x1x128xf32>
    %112 = vector.broadcast %109 : vector<4x8x1xf32> to vector<4x8x128xf32>
    %113 = vector.broadcast %111 : vector<1x1x128xf32> to vector<4x8x128xf32>
    %114 = arith.mulf %112, %113 : vector<4x8x128xf32>
    %115 = arith.addf %108, %114 : vector<4x8x128xf32>
    %116 = vector.extract_strided_slice %53 {offsets = [0, 0, 9], sizes = [4, 8, 1], strides = [1, 1, 1]} : vector<4x8x128xf32> to vector<4x8x1xf32>
    %c15 = arith.constant 15 : index
    %c0_24 = arith.constant 0 : index
    %117 = vector.load %arg1[%c15, %c0_24] : memref<24x128xf32, #tpu.memory_space<vmem>>, vector<1x128xf32>
    %118 = vector.shape_cast %117 : vector<1x128xf32> to vector<1x1x128xf32>
    %119 = vector.broadcast %116 : vector<4x8x1xf32> to vector<4x8x128xf32>
    %120 = vector.broadcast %118 : vector<1x1x128xf32> to vector<4x8x128xf32>
    %121 = arith.mulf %119, %120 : vector<4x8x128xf32>
    %122 = arith.addf %115, %121 : vector<4x8x128xf32>
    %c16 = arith.constant 16 : index
    %c0_25 = arith.constant 0 : index
    %123 = vector.load %arg1[%c16, %c0_25] : memref<24x128xf32, #tpu.memory_space<vmem>>, vector<1x128xf32>
    %124 = vector.shape_cast %123 : vector<1x128xf32> to vector<1x1x128xf32>
    %125 = vector.broadcast %124 : vector<1x1x128xf32> to vector<4x8x128xf32>
    %126 = arith.addf %122, %125 : vector<4x8x128xf32>
    %127 = tpu.iota {dimensions = array<i32: 2>} : vector<4x8x128xi32>
    %c4_i32 = arith.constant 4 : i32
    %128 = vector.broadcast %c4_i32 : i32 to vector<4x8x128xi32>
    %129 = arith.cmpi slt, %127, %128 : vector<4x8x128xi32>
    %cst_26 = arith.constant -1.000000e+30 : f32
    %130 = vector.broadcast %cst_26 : f32 to vector<4x8x128xf32>
    %131 = arith.select %129, %126, %130 : vector<4x8x128xi1>, vector<4x8x128xf32>
    %cst_27 = arith.constant dense<0xFF800000> : vector<4x8xf32>
    %132 = vector.multi_reduction <maximumf>, %131, %cst_27 [2] : vector<4x8x128xf32> to vector<4x8xf32>
    %133 = vector.shape_cast %132 : vector<4x8xf32> to vector<4x8x1xf32>
    %134 = vector.broadcast %133 : vector<4x8x1xf32> to vector<4x8x128xf32>
    %135 = arith.subf %131, %134 : vector<4x8x128xf32>
    %136 = math.exp %135 : vector<4x8x128xf32>
    %cst_28 = arith.constant dense<0.000000e+00> : vector<4x8xf32>
    %137 = vector.multi_reduction <add>, %136, %cst_28 [2] : vector<4x8x128xf32> to vector<4x8xf32>
    %138 = vector.shape_cast %137 : vector<4x8xf32> to vector<4x8x1xf32>
    %139 = vector.broadcast %138 : vector<4x8x1xf32> to vector<4x8x128xf32>
    %140 = arith.divf %136, %139 : vector<4x8x128xf32>
    %c0_29 = arith.constant 0 : index
    %c0_30 = arith.constant 0 : index
    %c0_31 = arith.constant 0 : index
    %141 = vector.load %arg2[%c0_29, %c0_30, %c0_31] : memref<4x8x128xf32, #tpu.memory_space<vmem>>, vector<4x8x128xf32>
    tpu.vector_store %arg2[%c0_29, %c0_30, %c0_31], %140 {strides = array<i32>} : memref<4x8x128xf32, #tpu.memory_space<vmem>>, vector<4x8x128xf32>,
    return
  }
}

</mosaic_0001>

<llo_original>
// kernel: tpu_custom_call.1
$region0: #{tpu_custom_call.1}
  #allocation0 [shape = 'u32[]', space=smem, size = 0x4, offset = 0x4, fixed_abs, tag = 'smem constant byte address 0x4 - core index']
  #allocation1 [shape = 'u32[144,128]{1,0:T(1,128)}', space=vmem, size = 0x12000, scoped, tag = 'internal scratch']
  %s0 = inlined_call_operand.vmem [shape: f32[4,8,3], index: 0, kind: input, shape index: {}]
  %s1 = inlined_call_operand.vmem [shape: f32[24,128], index: 1, kind: input, shape index: {}]
  %s2 = inlined_call_operand.hbm [shape: f32[4,8,128], index: 2, kind: output, shape index: {}]
  %s3 = sld [smem:[#allocation0]]
  $region18: #{tpu_custom_call.1} parent=0
    _
  %s5 = ssub.s32 1, %s3
  %s6 = scalar_select 0, %s5, %s3
  $region1: #{tpu_custom_call.1} parent=0
    #allocation2 [shape = 'u8[16384]{0}', space=vmem, size = 0x4000, scoped, tag = 'output window, operand 0, single buffered']
    #allocation3 [shape = 's32[1]{0}', space=sflag, size = 0x4, scoped, tag = 'scoped memory for tpu_custom_call.1']
    %7 = vsyncpa [#allocation3], 0
    // Predicated region
    $region2: #{tpu_custom_call.1} parent=1 // pred_check
      _
    $region3: #{tpu_custom_call.1} parent=1 // pred_check_branch
      %9 = sbr.rel (0) target = $region5
    $region4: #{tpu_custom_call.1} parent=1 // pred_region
      _
    $region5: #{tpu_custom_call.1} parent=1 // pred_fallthru
      _
    // Predicated region
    $region6: #{tpu_custom_call.1} parent=1 // pred_check
      _
    $region7: #{tpu_custom_call.1} parent=1 // pred_check_branch
      %11 = sbr.rel (0) target = $region9
    $region8: #{tpu_custom_call.1} parent=1 // pred_region
      _
    $region9: #{tpu_custom_call.1} parent=1 // pred_fallthru
      _
    %v12 = vld [vmem:[%s0] sm:$0xff]
    %v13 = vld [vmem:[%s0 + $0x8] sm:$0xff]
    %v14 = vld [vmem:[%s0 + $0x10] sm:$0xff]
    %v15 = vld [vmem:[%s0 + $0x18] sm:$0xff]
    %v16 = vld [vmem:[%s1] sm:$0x1]
    %18 = vset.pattern.permute.xlu0 0
    %19 = vperm.xlu0 %18, %v12
    %v20 = vpop.permute.xlu0 %19
    %23 = vset.pattern.permute.xlu0 0
    %24 = vperm.xlu0 %23, %v13
    %v25 = vpop.permute.xlu0 %24
    %28 = vset.pattern.permute.xlu0 0
    %29 = vperm.xlu0 %28, %v14
    %v30 = vpop.permute.xlu0 %29
    %33 = vset.pattern.permute.xlu0 0
    %34 = vperm.xlu0 %33, %v15
    %v35 = vpop.permute.xlu0 %34
    %v37 = vlaneseq
    %v38 = vshrl.u32 %v37, 7
    %v39 = vsub.s32 0, %v38
    %v40 = vrot.slane %v16, %v39
    %v41 = vmul.f32 %v20, %v40
    %v42 = vmul.f32 %v25, %v40
    %v43 = vmul.f32 %v30, %v40
    %v44 = vmul.f32 %v35, %v40
    %v45 = vld [vmem:[%s1 + $0x1] sm:$0x1]
    %46 = vset.pattern.permute.xlu0 1
    %47 = vperm.xlu0 %46, %v12
    %v48 = vpop.permute.xlu0 %47
    %50 = vset.pattern.permute.xlu0 1
    %51 = vperm.xlu0 %50, %v13
    %v52 = vpop.permute.xlu0 %51
    %54 = vset.pattern.permute.xlu0 1
    %55 = vperm.xlu0 %54, %v14
    %v56 = vpop.permute.xlu0 %55
    %58 = vset.pattern.permute.xlu0 1
    %59 = vperm.xlu0 %58, %v15
    %v60 = vpop.permute.xlu0 %59
    %v62 = vlaneseq
    %v63 = vshrl.u32 %v62, 7
    %v64 = vsub.s32 0, %v63
    %v65 = vrot.slane %v45, %v64
    %v66 = vmul.f32 %v48, %v65
    %v67 = vmul.f32 %v52, %v65
    %v68 = vmul.f32 %v56, %v65
    %v69 = vmul.f32 %v60, %v65
    %v70 = vadd.f32 %v41, %v66
    %v71 = vadd.f32 %v42, %v67
    %v72 = vadd.f32 %v43, %v68
    %v73 = vadd.f32 %v44, %v69
    %v74 = vld [vmem:[%s1 + $0x2] sm:$0x1]
    %75 = vset.pattern.permute.xlu0 2
    %76 = vperm.xlu0 %75, %v12
    %v77 = vpop.permute.xlu0 %76
    %79 = vset.pattern.permute.xlu0 2
    %80 = vperm.xlu0 %79, %v13
    %v81 = vpop.permute.xlu0 %80
    %83 = vset.pattern.permute.xlu0 2
    %84 = vperm.xlu0 %83, %v14
    %v85 = vpop.permute.xlu0 %84
    %87 = vset.pattern.permute.xlu0 2
    %88 = vperm.xlu0 %87, %v15
    %v89 = vpop.permute.xlu0 %88
    %v91 = vlaneseq
    %v92 = vshrl.u32 %v91, 7
    %v93 = vsub.s32 0, %v92
    %v94 = vrot.slane %v74, %v93
    %v95 = vmul.f32 %v77, %v94
    %v96 = vmul.f32 %v81, %v94
    %v97 = vmul.f32 %v85, %v94
    %v98 = vmul.f32 %v89, %v94
    %v99 = vadd.f32 %v70, %v95
    %v100 = vadd.f32 %v71, %v96
    %v101 = vadd.f32 %v72, %v97
    %v102 = vadd.f32 %v73, %v98
    %v103 = vld [vmem:[%s1 + $0x3] sm:$0x1]
    %v104 = vlaneseq
    %v105 = vshrl.u32 %v104, 7
    %v106 = vsub.s32 0, %v105
    %v107 = vrot.slane %v103, %v106
    %v108 = vadd.f32 %v99, %v107
    %v109 = vadd.f32 %v100, %v107
    %v110 = vadd.f32 %v101, %v107
    %v111 = vadd.f32 %v102, %v107
    %vm112 = vcmp.gt.f32.partialorder %v108, 0.0
    %vm113 = vcmp.gt.f32.partialorder %v109, 0.0
    %vm114 = vcmp.gt.f32.partialorder %v110, 0.0
    %vm115 = vcmp.gt.f32.partialorder %v111, 0.0
    %v116 = vmul.f32 %v108, 0.2
    %v117 = vmul.f32 %v109, 0.2
    %v118 = vmul.f32 %v110, 0.2
    %v119 = vmul.f32 %v111, 0.2
    %v120 = vsel %vm112, %v108, %v116
    %v121 = vsel %vm113, %v109, %v117
    %v122 = vsel %vm114, %v110, %v118
    %v123 = vsel %vm115, %v111, %v119
    %v124 = vrot.slane %v120, 4
    %v125 = vadd.f32 %v120, %v124
    %v126 = vrot.slane %v125, 2
    %v127 = vadd.f32 %v125, %v126
    %v128 = vrot.slane %v127, 1
    %v129 = vadd.f32 %v127, %v128
    %v130 = vrot.slane %v121, 4
    %v131 = vadd.f32 %v121, %v130
    %v132 = vrot.slane %v131, 2
    %v133 = vadd.f32 %v131, %v132
    %v134 = vrot.slane %v133, 1
    %v135 = vadd.f32 %v133, %v134
    %v136 = vrot.slane %v122, 4
    %v137 = vadd.f32 %v122, %v136
    %v138 = vrot.slane %v137, 2
    %v139 = vadd.f32 %v137, %v138
    %v140 = vrot.slane %v139, 1
    %v141 = vadd.f32 %v139, %v140
    %v142 = vrot.slane %v123, 4
    %v143 = vadd.f32 %v123, %v142
    %v144 = vrot.slane %v143, 2
    %v145 = vadd.f32 %v143, %v144
    %v146 = vrot.slane %v145, 1
    %v147 = vadd.f32 %v145, %v146
    %v148 = vrcp.pop 8.0
    %v149 = vmul.f32 %v129, %v148
    %v150 = vmul.f32 %v135, %v148
    %v151 = vmul.f32 %v141, %v148
    %v152 = vmul.f32 %v147, %v148
    %v153 = vsub.f32 %v120, %v149
    %v154 = vsub.f32 %v121, %v150
    %v155 = vsub.f32 %v122, %v151
    %v156 = vsub.f32 %v123, %v152
    %v157 = vmul.f32 %v153, %v153
    %v158 = vmul.f32 %v154, %v154
    %v159 = vmul.f32 %v155, %v155
    %v160 = vmul.f32 %v156, %v156
    %v161 = vrot.slane %v157, 4
    %v162 = vadd.f32 %v157, %v161
    %v163 = vrot.slane %v162, 2
    %v164 = vadd.f32 %v162, %v163
    %v165 = vrot.slane %v164, 1
    %v166 = vadd.f32 %v164, %v165
    %v167 = vrot.slane %v158, 4
    %v168 = vadd.f32 %v158, %v167
    %v169 = vrot.slane %v168, 2
    %v170 = vadd.f32 %v168, %v169
    %v171 = vrot.slane %v170, 1
    %v172 = vadd.f32 %v170, %v171
    %v173 = vrot.slane %v159, 4
    %v174 = vadd.f32 %v159, %v173
    %v175 = vrot.slane %v174, 2
    %v176 = vadd.f32 %v174, %v175
    %v177 = vrot.slane %v176, 1
    %v178 = vadd.f32 %v176, %v177
    %v179 = vrot.slane %v160, 4
    %v180 = vadd.f32 %v160, %v179
    %v181 = vrot.slane %v180, 2
    %v182 = vadd.f32 %v180, %v181
    %v183 = vrot.slane %v182, 1
    %v184 = vadd.f32 %v182, %v183
    %v185 = vmul.f32 %v166, %v148
    %v186 = vmul.f32 %v172, %v148
    %v187 = vmul.f32 %v178, %v148
    %v188 = vmul.f32 %v184, %v148
    %v189 = vadd.f32 %v185, 1e-05
    %v190 = vadd.f32 %v186, 1e-05
    %v191 = vadd.f32 %v187, 1e-05
    %v192 = vadd.f32 %v188, 1e-05
    %v193 = vrsqrt.pop %v189
    %v194 = vrsqrt.pop %v190
    %v195 = vrsqrt.pop %v191
    %v196 = vrsqrt.pop %v192
    %v197 = vmul.f32 %v153, %v193
    %v198 = vmul.f32 %v154, %v194
    %v199 = vmul.f32 %v155, %v195
    %v200 = vmul.f32 %v156, %v196
    %v201 = vld [vmem:[%s1 + $0x4] sm:$0x1]
    %v202 = vlaneseq
    %v203 = vshrl.u32 %v202, 7
    %v204 = vsub.s32 0, %v203
    %v205 = vrot.slane %v201, %v204
    %v206 = vmul.f32 %v197, %v205
    %v207 = vmul.f32 %v198, %v205
    %v208 = vmul.f32 %v199, %v205
    %v209 = vmul.f32 %v200, %v205
    %v210 = vld [vmem:[%s1 + $0x5] sm:$0x1]
    %v211 = vlaneseq
    %v212 = vshrl.u32 %v211, 7
    %v213 = vsub.s32 0, %v212
    %v214 = vrot.slane %v210, %v213
    %v215 = vadd.f32 %v206, %v214
    %v216 = vadd.f32 %v207, %v214
    %v217 = vadd.f32 %v208, %v214
    %v218 = vadd.f32 %v209, %v214
    %v219 = vld [vmem:[%s1 + $0x6] sm:$0x1]
    %221 = vset.pattern.permute.xlu0 0
    %222 = vperm.xlu0 %221, %v215
    %v223 = vpop.permute.xlu0 %222
    %226 = vset.pattern.permute.xlu0 0
    %227 = vperm.xlu0 %226, %v216
    %v228 = vpop.permute.xlu0 %227
    %231 = vset.pattern.permute.xlu0 0
    %232 = vperm.xlu0 %231, %v217
    %v233 = vpop.permute.xlu0 %232
    %236 = vset.pattern.permute.xlu0 0
    %237 = vperm.xlu0 %236, %v218
    %v238 = vpop.permute.xlu0 %237
    %v240 = vlaneseq
    %v241 = vshrl.u32 %v240, 7
    %v242 = vsub.s32 0, %v241
    %v243 = vrot.slane %v219, %v242
    %v244 = vmul.f32 %v223, %v243
    %v245 = vmul.f32 %v228, %v243
    %v246 = vmul.f32 %v233, %v243
    %v247 = vmul.f32 %v238, %v243
    %v248 = vld [vmem:[%s1 + $0x7] sm:$0x1]
    %249 = vset.pattern.permute.xlu0 1
    %250 = vperm.xlu0 %249, %v215
    %v251 = vpop.permute.xlu0 %250
    %253 = vset.pattern.permute.xlu0 1
    %254 = vperm.xlu0 %253, %v216
    %v255 = vpop.permute.xlu0 %254
    %257 = vset.pattern.permute.xlu0 1
    %258 = vperm.xlu0 %257, %v217
    %v259 = vpop.permute.xlu0 %258
    %261 = vset.pattern.permute.xlu0 1
    %262 = vperm.xlu0 %261, %v218
    %v263 = vpop.permute.xlu0 %262
    %v265 = vlaneseq
    %v266 = vshrl.u32 %v265, 7
    %v267 = vsub.s32 0, %v266
    %v268 = vrot.slane %v248, %v267
    %v269 = vmul.f32 %v251, %v268
    %v270 = vmul.f32 %v255, %v268
    %v271 = vmul.f32 %v259, %v268
    %v272 = vmul.f32 %v263, %v268
    %v273 = vadd.f32 %v244, %v269
    %v274 = vadd.f32 %v245, %v270
    %v275 = vadd.f32 %v246, %v271
    %v276 = vadd.f32 %v247, %v272
    %v277 = vld [vmem:[%s1 + $0x8] sm:$0x1]
    %278 = vset.pattern.permute.xlu0 2
    %279 = vperm.xlu0 %278, %v215
    %v280 = vpop.permute.xlu0 %279
    %282 = vset.pattern.permute.xlu0 2
    %283 = vperm.xlu0 %282, %v216
    %v284 = vpop.permute.xlu0 %283
    %286 = vset.pattern.permute.xlu0 2
    %287 = vperm.xlu0 %286, %v217
    %v288 = vpop.permute.xlu0 %287
    %290 = vset.pattern.permute.xlu0 2
    %291 = vperm.xlu0 %290, %v218
    %v292 = vpop.permute.xlu0 %291
    %v294 = vlaneseq
    %v295 = vshrl.u32 %v294, 7
    %v296 = vsub.s32 0, %v295
    %v297 = vrot.slane %v277, %v296
    %v298 = vmul.f32 %v280, %v297
    %v299 = vmul.f32 %v284, %v297
    %v300 = vmul.f32 %v288, %v297
    %v301 = vmul.f32 %v292, %v297
    %v302 = vadd.f32 %v273, %v298
    %v303 = vadd.f32 %v274, %v299
    %v304 = vadd.f32 %v275, %v300
    %v305 = vadd.f32 %v276, %v301
    %v306 = vld [vmem:[%s1 + $0x9] sm:$0x1]
    %307 = vset.pattern.permute.xlu0 3
    %308 = vperm.xlu0 %307, %v215
    %v309 = vpop.permute.xlu0 %308
    %311 = vset.pattern.permute.xlu0 3
    %312 = vperm.xlu0 %311, %v216
    %v313 = vpop.permute.xlu0 %312
    %315 = vset.pattern.permute.xlu0 3
    %316 = vperm.xlu0 %315, %v217
    %v317 = vpop.permute.xlu0 %316
    %319 = vset.pattern.permute.xlu0 3
    %320 = vperm.xlu0 %319, %v218
    %v321 = vpop.permute.xlu0 %320
    %v323 = vlaneseq
    %v324 = vshrl.u32 %v323, 7
    %v325 = vsub.s32 0, %v324
    %v326 = vrot.slane %v306, %v325
    %v327 = vmul.f32 %v309, %v326
    %v328 = vmul.f32 %v313, %v326
    %v329 = vmul.f32 %v317, %v326
    %v330 = vmul.f32 %v321, %v326
    %v331 = vadd.f32 %v302, %v327
    %v332 = vadd.f32 %v303, %v328
    %v333 = vadd.f32 %v304, %v329
    %v334 = vadd.f32 %v305, %v330
    %v335 = vld [vmem:[%s1 + $0xa] sm:$0x1]
    %336 = vset.pattern.permute.xlu0 4
    %337 = vperm.xlu0 %336, %v215
    %v338 = vpop.permute.xlu0 %337
    %340 = vset.pattern.permute.xlu0 4
    %341 = vperm.xlu0 %340, %v216
    %v342 = vpop.permute.xlu0 %341
    %344 = vset.pattern.permute.xlu0 4
    %345 = vperm.xlu0 %344, %v217
    %v346 = vpop.permute.xlu0 %345
    %348 = vset.pattern.permute.xlu0 4
    %349 = vperm.xlu0 %348, %v218
    %v350 = vpop.permute.xlu0 %349
    %v352 = vlaneseq
    %v353 = vshrl.u32 %v352, 7
    %v354 = vsub.s32 0, %v353
    %v355 = vrot.slane %v335, %v354
    %v356 = vmul.f32 %v338, %v355
    %v357 = vmul.f32 %v342, %v355
    %v358 = vmul.f32 %v346, %v355
    %v359 = vmul.f32 %v350, %v355
    %v360 = vadd.f32 %v331, %v356
    %v361 = vadd.f32 %v332, %v357
    %v362 = vadd.f32 %v333, %v358
    %v363 = vadd.f32 %v334, %v359
    %v364 = vld [vmem:[%s1 + $0xb] sm:$0x1]
    %365 = vset.pattern.permute.xlu0 5
    %366 = vperm.xlu0 %365, %v215
    %v367 = vpop.permute.xlu0 %366
    %369 = vset.pattern.permute.xlu0 5
    %370 = vperm.xlu0 %369, %v216
    %v371 = vpop.permute.xlu0 %370
    %373 = vset.pattern.permute.xlu0 5
    %374 = vperm.xlu0 %373, %v217
    %v375 = vpop.permute.xlu0 %374
    %377 = vset.pattern.permute.xlu0 5
    %378 = vperm.xlu0 %377, %v218
    %v379 = vpop.permute.xlu0 %378
    %v381 = vlaneseq
    %v382 = vshrl.u32 %v381, 7
    %v383 = vsub.s32 0, %v382
    %v384 = vrot.slane %v364, %v383
    %v385 = vmul.f32 %v367, %v384
    %v386 = vmul.f32 %v371, %v384
    %v387 = vmul.f32 %v375, %v384
    %v388 = vmul.f32 %v379, %v384
    %v389 = vadd.f32 %v360, %v385
    %v390 = vadd.f32 %v361, %v386
    %v391 = vadd.f32 %v362, %v387
    %v392 = vadd.f32 %v363, %v388
    %v393 = vld [vmem:[%s1 + $0xc] sm:$0x1]
    %394 = vset.pattern.permute.xlu0 6
    %395 = vperm.xlu0 %394, %v215
    %v396 = vpop.permute.xlu0 %395
    %398 = vset.pattern.permute.xlu0 6
    %399 = vperm.xlu0 %398, %v216
    %v400 = vpop.permute.xlu0 %399
    %402 = vset.pattern.permute.xlu0 6
    %403 = vperm.xlu0 %402, %v217
    %v404 = vpop.permute.xlu0 %403
    %406 = vset.pattern.permute.xlu0 6
    %407 = vperm.xlu0 %406, %v218
    %v408 = vpop.permute.xlu0 %407
    %v410 = vlaneseq
    %v411 = vshrl.u32 %v410, 7
    %v412 = vsub.s32 0, %v411
    %v413 = vrot.slane %v393, %v412
    %v414 = vmul.f32 %v396, %v413
    %v415 = vmul.f32 %v400, %v413
    %v416 = vmul.f32 %v404, %v413
    %v417 = vmul.f32 %v408, %v413
    %v418 = vadd.f32 %v389, %v414
    %v419 = vadd.f32 %v390, %v415
    %v420 = vadd.f32 %v391, %v416
    %v421 = vadd.f32 %v392, %v417
    %v422 = vld [vmem:[%s1 + $0xd] sm:$0x1]
    %423 = vset.pattern.permute.xlu0 7
    %424 = vperm.xlu0 %423, %v215
    %v425 = vpop.permute.xlu0 %424
    %427 = vset.pattern.permute.xlu0 7
    %428 = vperm.xlu0 %427, %v216
    %v429 = vpop.permute.xlu0 %428
    %431 = vset.pattern.permute.xlu0 7
    %432 = vperm.xlu0 %431, %v217
    %v433 = vpop.permute.xlu0 %432
    %435 = vset.pattern.permute.xlu0 7
    %436 = vperm.xlu0 %435, %v218
    %v437 = vpop.permute.xlu0 %436
    %v439 = vlaneseq
    %v440 = vshrl.u32 %v439, 7
    %v441 = vsub.s32 0, %v440
    %v442 = vrot.slane %v422, %v441
    %v443 = vmul.f32 %v425, %v442
    %v444 = vmul.f32 %v429, %v442
    %v445 = vmul.f32 %v433, %v442
    %v446 = vmul.f32 %v437, %v442
    %v447 = vadd.f32 %v418, %v443
    %v448 = vadd.f32 %v419, %v444
    %v449 = vadd.f32 %v420, %v445
    %v450 = vadd.f32 %v421, %v446
    %v451 = vld [vmem:[%s1 + $0xe] sm:$0x1]
    %452 = vset.pattern.permute.xlu0 8
    %453 = vperm.xlu0 %452, %v215
    %v454 = vpop.permute.xlu0 %453
    %456 = vset.pattern.permute.xlu0 8
    %457 = vperm.xlu0 %456, %v216
    %v458 = vpop.permute.xlu0 %457
    %460 = vset.pattern.permute.xlu0 8
    %461 = vperm.xlu0 %460, %v217
    %v462 = vpop.permute.xlu0 %461
    %464 = vset.pattern.permute.xlu0 8
    %465 = vperm.xlu0 %464, %v218
    %v466 = vpop.permute.xlu0 %465
    %v468 = vlaneseq
    %v469 = vshrl.u32 %v468, 7
    %v470 = vsub.s32 0, %v469
    %v471 = vrot.slane %v451, %v470
    %v472 = vmul.f32 %v454, %v471
    %v473 = vmul.f32 %v458, %v471
    %v474 = vmul.f32 %v462, %v471
    %v475 = vmul.f32 %v466, %v471
    %v476 = vadd.f32 %v447, %v472
    %v477 = vadd.f32 %v448, %v473
    %v478 = vadd.f32 %v449, %v474
    %v479 = vadd.f32 %v450, %v475
    %v480 = vld [vmem:[%s1 + $0xf] sm:$0x1]
    %481 = vset.pattern.permute.xlu0 9
    %482 = vperm.xlu0 %481, %v215
    %v483 = vpop.permute.xlu0 %482
    %485 = vset.pattern.permute.xlu0 9
    %486 = vperm.xlu0 %485, %v216
    %v487 = vpop.permute.xlu0 %486
    %489 = vset.pattern.permute.xlu0 9
    %490 = vperm.xlu0 %489, %v217
    %v491 = vpop.permute.xlu0 %490
    %493 = vset.pattern.permute.xlu0 9
    %494 = vperm.xlu0 %493, %v218
    %v495 = vpop.permute.xlu0 %494
    %v497 = vlaneseq
    %v498 = vshrl.u32 %v497, 7
    %v499 = vsub.s32 0, %v498
    %v500 = vrot.slane %v480, %v499
    %v501 = vmul.f32 %v483, %v500
    %v502 = vmul.f32 %v487, %v500
    %v503 = vmul.f32 %v491, %v500
    %v504 = vmul.f32 %v495, %v500
    %v505 = vadd.f32 %v476, %v501
    %v506 = vadd.f32 %v477, %v502
    %v507 = vadd.f32 %v478, %v503
    %v508 = vadd.f32 %v479, %v504
    %v509 = vld [vmem:[%s1 + $0x10] sm:$0x1]
    %v510 = vlaneseq
    %v511 = vshrl.u32 %v510, 7
    %v512 = vsub.s32 0, %v511
    %v513 = vrot.slane %v509, %v512
    %v514 = vadd.f32 %v505, %v513
    %v515 = vadd.f32 %v506, %v513
    %v516 = vadd.f32 %v507, %v513
    %v517 = vadd.f32 %v508, %v513
    %v518 = vlaneseq
    %v519 = vand.u32 %v518, 127
    %vm520 = vcmp.lt.s32.totalorder %v519, 4
    %v521 = vsel %vm520, %v514, -1e+30
    %v522 = vsel %vm520, %v515, -1e+30
    %v523 = vsel %vm520, %v516, -1e+30
    %v524 = vsel %vm520, %v517, -1e+30
    %525 = vmax.xlane.f32.xlu0 %v521
    %v526 = vpop.xlane.xlu0 %525
    %527 = vmax.xlane.f32.xlu0 %v522
    %v528 = vpop.xlane.xlu0 %527
    %529 = vmax.xlane.f32.xlu0 %v523
    %v530 = vpop.xlane.xlu0 %529
    %531 = vmax.xlane.f32.xlu0 %v524
    %v532 = vpop.xlane.xlu0 %531
    %v533 = vsub.f32 %v521, %v526
    %v534 = vsub.f32 %v522, %v528
    %v535 = vsub.f32 %v523, %v530
    %v536 = vsub.f32 %v524, %v532
    %v537 = vmul.f32 %v533, 1.442695
    %v538 = vpow.pop %v537
    %v539 = vmul.f32 %v534, 1.442695
    %v540 = vpow.pop %v539
    %v541 = vmul.f32 %v535, 1.442695
    %v542 = vpow.pop %v541
    %v543 = vmul.f32 %v536, 1.442695
    %v544 = vpow.pop %v543
    %545 = vadd.xlane.f32.xlu0 %v538
    %v546 = vpop.xlane.xlu0 %545
    %547 = vadd.xlane.f32.xlu0 %v540
    %v548 = vpop.xlane.xlu0 %547
    %549 = vadd.xlane.f32.xlu0 %v542
    %v550 = vpop.xlane.xlu0 %549
    %551 = vadd.xlane.f32.xlu0 %v544
    %v552 = vpop.xlane.xlu0 %551
    %v553 = vrcp.pop %v546
    %v554 = vmul.f32 %v538, %v553
    %v555 = vrcp.pop %v548
    %v556 = vmul.f32 %v540, %v555
    %v557 = vrcp.pop %v550
    %v558 = vmul.f32 %v542, %v557
    %v559 = vrcp.pop %v552
    %v560 = vmul.f32 %v544, %v559
    %561 = vst [vmem:[#allocation2] sm:$0xff] %v554
    %562 = vst [vmem:[#allocation2 + $0x8] sm:$0xff] %v556
    %563 = vst [vmem:[#allocation2 + $0x10] sm:$0xff] %v558
    %564 = vst [vmem:[#allocation2 + $0x18] sm:$0xff] %v560
    // Predicated region
    $region10: #{tpu_custom_call.1} parent=1 // pred_check
      _
    $region11: #{tpu_custom_call.1} parent=1 // pred_check_branch
      %566 = sbr.rel (0) target = $region13
    $region12: #{tpu_custom_call.1} parent=1 // pred_region
      %s568 = ssub.s32 512, 512
      %569 = vsyncadd [#allocation3], %s568
      %s570 = sshll.u32 [#allocation2], 4
      %s571 = int_to_ptr.vmem [resolvable:$true] %s570
      %576 = dma.vmem_to_hbm [thread:$0]  %s571, 512, %s2, [#allocation3], 128, 128, 8
    $region13: #{tpu_custom_call.1} parent=1 // pred_fallthru
      _
    // Predicated region
    $region14: #{tpu_custom_call.1} parent=1 // pred_check
      _
    $region15: #{tpu_custom_call.1} parent=1 // pred_check_branch
      %578 = sbr.rel (0) target = $region17
    $region16: #{tpu_custom_call.1} parent=1 // pred_region
      %579 = dma.done [#allocation3], 512
    $region17: #{tpu_custom_call.1} parent=1 // pred_fallthru
      _
    %580 = vsyncpa [#allocation3], 1

</llo_original>
